<compile_context>
chip_gen: v5e
topology: v5e:2x2
jax: 0.10.0
libtpu: 0.0.40
codegen_flags: <defaults>
</compile_context>

<pallas_src>
import functools

import jax
import jax.numpy as jnp
from jax.experimental import pallas as pl
from jax.experimental.pallas import tpu as pltpu


# ----------------------------------------------------------------------------
# helpers
# ----------------------------------------------------------------------------
def _round_up(v, m):
    return -(-v // m) * m


def _choose_tile_n(n_rows, f_pad, target_bytes=4 << 20):
    """Pick a row-tile: ~target_bytes per input tile, multiple of 8, <= batch."""
    t = (target_bytes // (f_pad * 4)) // 8 * 8
    t = max(8, int(t))
    n8 = _round_up(max(int(n_rows), 1), 8)
    return min(t, n8)


def _pad2d(x2d, n_pad, f_pad):
    n, f = x2d.shape
    if n == n_pad and f == f_pad:
        return x2d
    return jnp.pad(x2d, ((0, n_pad - n), (0, f_pad - f)))


def _pad_vec(v, f_pad):
    f = v.shape[0]
    if f == f_pad:
        return v
    return jnp.pad(v, (0, f_pad - f))


# ----------------------------------------------------------------------------
# Kernel 1: per-feature partial sums / sums of squares
#   grid = (splits, steps)  -- splits is a "parallel" axis (2 on big batches,
#   so v7x can use both TensorCores); steps is the sequential reduction axis.
#   The (1, 8, Fp) output blocks are resident accumulators (same block index
#   across the reduction axis); cross-sublane reduce happens in the wrapper.
# ----------------------------------------------------------------------------
def _stats_kernel(x_ref, psum_ref, psq_ref):
    i = pl.program_id(1)

    @pl.when(i == 0)
    def _():
        psum_ref[...] = jnp.zeros_like(psum_ref)
        psq_ref[...] = jnp.zeros_like(psq_ref)

    x = x_ref[...]                      # (tile_n, Fp) float32
    tn, fp = x.shape
    x3 = x.reshape(tn // 8, 8, fp)      # sublane-aligned split: pure VPU adds
    psum_ref[...] += jnp.sum(x3, axis=0)          # broadcast (8,Fp)->(1,8,Fp)
    psq_ref[...] += jnp.sum(x3 * x3, axis=0)


def batch_mean_var(x2d):
    """x2d: [N, F] -> (mean [F], population var [F]) via a Pallas reduction."""
    N, F = x2d.shape
    Fp = _round_up(F, 128)
    tile_n = _choose_tile_n(N, Fp)
    n8 = _round_up(N, 8)
    splits = 2 if n8 >= 2 * tile_n else 1
    steps = -(-N // (splits * tile_n))
    n_pad = splits * steps * tile_n

    xp = _pad2d(x2d.astype(jnp.float32), n_pad, Fp)

    tile_bytes = tile_n * Fp * 4
    vmem_limit = int(min(40 << 20, 2 * tile_bytes + (4 << 20)))

    psum, psq = pl.pallas_call(
        _stats_kernel,
        out_shape=(
            jax.ShapeDtypeStruct((splits, 8, Fp), jnp.float32),
            jax.ShapeDtypeStruct((splits, 8, Fp), jnp.float32),
        ),
        grid_spec=pltpu.PrefetchScalarGridSpec(
            num_scalar_prefetch=0,
            grid=(splits, steps),
            in_specs=[
                pl.BlockSpec((tile_n, Fp), lambda c, i: (c * steps + i, 0)),
            ],
            out_specs=[
                pl.BlockSpec((1, 8, Fp), lambda c, i: (c, 0, 0)),
                pl.BlockSpec((1, 8, Fp), lambda c, i: (c, 0, 0)),
            ],
        ),
        compiler_params=pltpu.CompilerParams(
            dimension_semantics=("parallel", "arbitrary"),
            vmem_limit_bytes=vmem_limit,
        ),
    )(xp)

    # tiny F-sized combine (one fused XLA op): cross-sublane + cross-half
    inv_n = jnp.float32(1.0 / N)
    bsum = jnp.sum(psum, axis=(0, 1))[:F]
    bsq = jnp.sum(psq, axis=(0, 1))[:F]
    mean = bsum * inv_n
    # unbiased=False population variance, clamped against f32 cancellation
    var = jnp.maximum(bsq * inv_n - mean * mean, 0.0)
    return mean, var


# ----------------------------------------------------------------------------
# Kernel 2: standardize   clamp((x - mean) * inv, -c, c)   (inv hoisted)
# Kernel 3: inverse       std * clamp(x, -c, c) + mean     (std hoisted)
# ----------------------------------------------------------------------------
def _normalize_kernel(mean_ref, inv_ref, x_ref, o_ref, *, clip_threshold):
    y = (x_ref[...] - mean_ref[...]) * inv_ref[...]
    o_ref[...] = jnp.clip(y, -clip_threshold, clip_threshold)


def _inverse_kernel(mean_ref, std_ref, x_ref, o_ref, *, clip_threshold):
    xc = jnp.clip(x_ref[...], -clip_threshold, clip_threshold)
    o_ref[...] = std_ref[...] * xc + mean_ref[...]


def _affine_apply(kernel, mean, vec, x2d):
    """Apply an elementwise (per-feature affine + clip) kernel over [N, F]."""
    N, F = x2d.shape
    Fp = _round_up(F, 128)
    tile_n = _choose_tile_n(N, Fp)
    steps = -(-N // tile_n)
    n_pad = steps * tile_n

    xp = _pad2d(x2d.astype(jnp.float32), n_pad, Fp)
    mp = _pad_vec(mean.astype(jnp.float32), Fp).reshape(1, Fp)
    vp = _pad_vec(vec.astype(jnp.float32), Fp).reshape(1, Fp)

    tile_bytes = tile_n * Fp * 4
    vmem_limit = int(min(48 << 20, 4 * tile_bytes + (4 << 20)))

    out = pl.pallas_call(
        kernel,
        out_shape=jax.ShapeDtypeStruct((n_pad, Fp), jnp.float32),
        grid_spec=pltpu.PrefetchScalarGridSpec(
            num_scalar_prefetch=0,
            grid=(steps,),
            in_specs=[
                pl.BlockSpec((1, Fp), lambda i: (0, 0)),
                pl.BlockSpec((1, Fp), lambda i: (0, 0)),
                pl.BlockSpec((tile_n, Fp), lambda i: (i, 0)),
            ],
            out_specs=pl.BlockSpec((tile_n, Fp), lambda i: (i, 0)),
        ),
        compiler_params=pltpu.CompilerParams(
            dimension_semantics=("parallel",),
            vmem_limit_bytes=vmem_limit,
        ),
    )(mp, vp, xp)
    return out[:N, :F]


# ----------------------------------------------------------------------------
# Module-equivalent wrapper (running buffers as plain jnp arrays, float32)
# ----------------------------------------------------------------------------
class RunningMeanStdPallas:
    def __init__(self, size, epsilon=1e-8, clip_threshold=5.0):
        self.size = int(size)
        self.epsilon = float(epsilon)
        self.clip_threshold = float(clip_threshold)
        self.running_mean = jnp.zeros((self.size,), dtype=jnp.float32)
        self.running_variance = jnp.ones((self.size,), dtype=jnp.float32)
        self.current_count = jnp.float32(1.0)

    def _parallel_variance(self, input_mean, input_var, input_count):
        """Chan parallel combine (tiny F-sized ops; fused by XLA)."""
        input_count = jnp.float32(input_count)
        delta = input_mean - self.running_mean
        total_count = self.current_count + input_count
        m2 = (self.running_variance * self.current_count
              + input_var * input_count
              + delta * delta * (self.current_count * input_count / total_count))
        self.running_mean = self.running_mean + delta * (input_count / total_count)
        self.running_variance = m2 / total_count
        self.current_count = total_count

    def __call__(self, x, train=False, inverse=False):
        x = jnp.asarray(x, dtype=jnp.float32)
        orig_shape = x.shape
        assert x.ndim >= 2, "expected at least [batch, size]"
        if x.ndim > 2:
            x2d = x.reshape(orig_shape[0] * orig_shape[1], -1)
        else:
            x2d = x
        N, F = x2d.shape
        assert F == self.size

        if train:
            bmean, bvar = batch_mean_var(x2d)      # Pallas reduction kernel
            self._parallel_variance(bmean, bvar, N)

        mean = self.running_mean
        var = self.running_variance
        if inverse:
            std = jnp.sqrt(var)                    # hoisted, once per call
            kernel = functools.partial(_inverse_kernel,
                                       clip_threshold=self.clip_threshold)
            out2d = _affine_apply(kernel, mean, std, x2d)
        else:
            inv = 1.0 / (jnp.sqrt(var) + self.epsilon)   # hoisted, once per call
            kernel = functools.partial(_normalize_kernel,
                                       clip_threshold=self.clip_threshold)
            out2d = _affine_apply(kernel, mean, inv, x2d)
        return out2d.reshape(orig_shape)


# ----------------------------------------------------------------------------
# Self-check
# ----------------------------------------------------------------------------
if __name__ == "__main__":
    key = jax.random.PRNGKey(0)
    B, T, F = 2, 8, 32
    x = jax.random.normal(key, (B, T, F), dtype=jnp.float32) * 3.0 + 1.5

    scaler = RunningMeanStdPallas(size=F)

    # training step: updates running stats and returns standardized x
    y_train = jax.block_until_ready(scaler(x, train=True))
    # eval step: standardize with the updated running stats
    y_eval = jax.block_until_ready(scaler(x, train=False))
    # inverse step: unscale
    y_inv = jax.block_until_ready(scaler(y_eval, inverse=True))

    # pure-JAX reference
    x2d = x.reshape(B * T, F)
    bmean = jnp.mean(x2d, axis=0)
    bvar = jnp.var(x2d, axis=0)
    count0, mean0, var0 = 1.0, jnp.zeros((F,)), jnp.ones((F,))
    n = float(B * T)
    delta = bmean - mean0
    total = count0 + n
    M2 = var0 * count0 + bvar * n + delta ** 2 * count0 * n / total
    rmean = mean0 + delta * n / total
    rvar = M2 / total

    eps, clip = scaler.epsilon, scaler.clip_threshold
    ref_eval = jnp.clip((x - rmean) / (jnp.sqrt(rvar) + eps), -clip, clip)
    ref_inv = jnp.sqrt(rvar) * jnp.clip(ref_eval, -clip, clip) + rmean

    assert jnp.allclose(y_train, ref_eval, atol=1e-4, rtol=1e-4)
    assert jnp.allclose(y_eval, ref_eval, atol=1e-4, rtol=1e-4)
    assert jnp.allclose(y_inv, ref_inv, atol=1e-4, rtol=1e-4)
    assert jnp.allclose(scaler.running_mean, rmean, atol=1e-4, rtol=1e-4)
    assert jnp.allclose(scaler.running_variance, rvar, atol=1e-4, rtol=1e-4)

    print("KERNEL_OK")
</pallas_src>

<mosaic_0001>
module attributes {stable_mosaic.version = 11 : i64} {
  func.func @_stats_kernel(%arg0: i32, %arg1: i32, %arg2: memref<16x128xf32, #tpu.memory_space<vmem>>, %arg3: memref<1x8x128xf32, #tpu.memory_space<vmem>>, %arg4: memref<1x8x128xf32, #tpu.memory_space<vmem>>) attributes {dimension_semantics = [#tpu.dimension_semantics<parallel>, #tpu.dimension_semantics<arbitrary>], iteration_bounds = array<i64: 1, 1>, scalar_prefetch = 0 : i64, scratch_operands = 0 : i64, tpu.core_type = #tpu.core_type<tc>, window_params = [{transform_indices = @transform_0, window_bounds = array<i64: 16, 128>}, {transform_indices = @transform_1, window_bounds = array<i64: 1, 8, 128>}, {transform_indices = @transform_2, window_bounds = array<i64: 1, 8, 128>}]} {
    %c0_i32 = arith.constant 0 : i32
    %0 = arith.cmpi eq, %arg1, %c0_i32 : i32
    %1 = arith.extui %0 : i1 to i32
    %c0_i32_0 = arith.constant 0 : i32
    %2 = arith.cmpi ne, %1, %c0_i32_0 : i32
    scf.if %2 {
      %cst_15 = arith.constant 0.000000e+00 : f32
      %16 = vector.broadcast %cst_15 : f32 to vector<1x8x128xf32>
      %c0_16 = arith.constant 0 : index
      %c0_17 = arith.constant 0 : index
      %c0_18 = arith.constant 0 : index
      %17 = vector.load %arg3[%c0_16, %c0_17, %c0_18] : memref<1x8x128xf32, #tpu.memory_space<vmem>>, vector<1x8x128xf32>
      tpu.vector_store %arg3[%c0_16, %c0_17, %c0_18], %16 {strides = array<i32>} : memref<1x8x128xf32, #tpu.memory_space<vmem>>, vector<1x8x128xf32>,
      %cst_19 = arith.constant 0.000000e+00 : f32
      %18 = vector.broadcast %cst_19 : f32 to vector<1x8x128xf32>
      %c0_20 = arith.constant 0 : index
      %c0_21 = arith.constant 0 : index
      %c0_22 = arith.constant 0 : index
      %19 = vector.load %arg4[%c0_20, %c0_21, %c0_22] : memref<1x8x128xf32, #tpu.memory_space<vmem>>, vector<1x8x128xf32>
      tpu.vector_store %arg4[%c0_20, %c0_21, %c0_22], %18 {strides = array<i32>} : memref<1x8x128xf32, #tpu.memory_space<vmem>>, vector<1x8x128xf32>,
    } else {
    }
    %c0 = arith.constant 0 : index
    %c0_1 = arith.constant 0 : index
    %3 = vector.load %arg2[%c0, %c0_1] : memref<16x128xf32, #tpu.memory_space<vmem>>, vector<16x128xf32>
    %4 = vector.shape_cast %3 : vector<16x128xf32> to vector<2x8x128xf32>
    %c0_2 = arith.constant 0 : index
    %c0_3 = arith.constant 0 : index
    %c0_4 = arith.constant 0 : index
    %5 = vector.load %arg3[%c0_2, %c0_3, %c0_4] : memref<1x8x128xf32, #tpu.memory_space<vmem>>, vector<1x8x128xf32>
    %cst = arith.constant dense<0.000000e+00> : vector<8x128xf32>
    %6 = vector.multi_reduction <add>, %4, %cst [0] : vector<2x8x128xf32> to vector<8x128xf32>
    %7 = vector.shape_cast %6 : vector<8x128xf32> to vector<1x8x128xf32>
    %8 = arith.addf %5, %7 : vector<1x8x128xf32>
    %c0_5 = arith.constant 0 : index
    %c0_6 = arith.constant 0 : index
    %c0_7 = arith.constant 0 : index
    %9 = vector.load %arg3[%c0_5, %c0_6, %c0_7] : memref<1x8x128xf32, #tpu.memory_space<vmem>>, vector<1x8x128xf32>
    tpu.vector_store %arg3[%c0_5, %c0_6, %c0_7], %8 {strides = array<i32>} : memref<1x8x128xf32, #tpu.memory_space<vmem>>, vector<1x8x128xf32>,
    %c0_8 = arith.constant 0 : index
    %c0_9 = arith.constant 0 : index
    %c0_10 = arith.constant 0 : index
    %10 = vector.load %arg4[%c0_8, %c0_9, %c0_10] : memref<1x8x128xf32, #tpu.memory_space<vmem>>, vector<1x8x128xf32>
    %11 = arith.mulf %4, %4 : vector<2x8x128xf32>
    %cst_11 = arith.constant dense<0.000000e+00> : vector<8x128xf32>
    %12 = vector.multi_reduction <add>, %11, %cst_11 [0] : vector<2x8x128xf32> to vector<8x128xf32>
    %13 = vector.shape_cast %12 : vector<8x128xf32> to vector<1x8x128xf32>
    %14 = arith.addf %10, %13 : vector<1x8x128xf32>
    %c0_12 = arith.constant 0 : index
    %c0_13 = arith.constant 0 : index
    %c0_14 = arith.constant 0 : index
    %15 = vector.load %arg4[%c0_12, %c0_13, %c0_14] : memref<1x8x128xf32, #tpu.memory_space<vmem>>, vector<1x8x128xf32>
    tpu.vector_store %arg4[%c0_12, %c0_13, %c0_14], %14 {strides = array<i32>} : memref<1x8x128xf32, #tpu.memory_space<vmem>>, vector<1x8x128xf32>,
    return
  }
  func.func @transform_0(%arg0: i32, %arg1: i32) -> (i32, i32) {
    %c1_i32 = arith.constant 1 : i32
    %0 = arith.muli %arg0, %c1_i32 : i32
    %1 = arith.addi %0, %arg1 : i32
    %c0_i32 = arith.constant 0 : i32
    %c0_i32_0 = arith.constant 0 : i32
    return %1, %c0_i32 : i32, i32
  }
  func.func @transform_1(%arg0: i32, %arg1: i32) -> (i32, i32, i32) {
    %c0_i32 = arith.constant 0 : i32
    %c0_i32_0 = arith.constant 0 : i32
    %c0_i32_1 = arith.constant 0 : i32
    return %arg0, %c0_i32, %c0_i32_0 : i32, i32, i32
  }
  func.func @transform_2(%arg0: i32, %arg1: i32) -> (i32, i32, i32) {
    %c0_i32 = arith.constant 0 : i32
    %c0_i32_0 = arith.constant 0 : i32
    %c0_i32_1 = arith.constant 0 : i32
    return %arg0, %c0_i32, %c0_i32_0 : i32, i32, i32
  }
}

</mosaic_0001>

<llo_original>
// kernel: tpu_custom_call.1
$region0: #{tpu_custom_call.1}
  #allocation0 [shape = 'u32[]', space=smem, size = 0x4, offset = 0x4, fixed_abs, tag = 'smem constant byte address 0x4 - core index']
  #allocation1 [shape = 'u32[72,128]{1,0:T(1,128)}', space=vmem, size = 0x9000, scoped, tag = 'internal scratch']
  %s0 = inlined_call_operand.hbm [shape: f32[16,128], index: 0, kind: input, shape index: {}]
  %s1 = inlined_call_operand.hbm [shape: f32[1,8,128], index: 1, kind: output, shape index: {0}]
  %s2 = inlined_call_operand.hbm [shape: f32[1,8,128], index: 2, kind: output, shape index: {1}]
  %3 = xla_tuple %s1, %s2
  %s4 = sld [smem:[#allocation0]]
  $region30: #{tpu_custom_call.1} parent=0
    _
  %s6 = ssub.s32 1, %s4
  %s7 = scalar_select 0, %s6, %s4
  $region1: #{tpu_custom_call.1} parent=0
    #allocation2 [shape = 'u8[8192]{0}', space=vmem, size = 0x2000, scoped, tag = 'input window, operand 0, single buffered']
    #allocation3 [shape = 's32[1]{0}', space=sflag, size = 0x4, scoped, tag = 'scoped memory for tpu_custom_call.1']
    #allocation4 [shape = 's32[1]{0}', space=sflag, size = 0x4, scoped, tag = 'scoped memory for tpu_custom_call.1']
    #allocation5 [shape = 'u8[4096]{0}', space=vmem, size = 0x1000, scoped, tag = 'output window, operand 0, single buffered']
    #allocation6 [shape = 'u8[4096]{0}', space=vmem, size = 0x1000, scoped, tag = 'output window, operand 1, single buffered']
    #allocation7 [shape = 's32[1]{0}', space=sflag, size = 0x4, scoped, tag = 'scoped memory for tpu_custom_call.1']
    %8 = vsyncpa [#allocation3], 0
    %9 = vsyncpa [#allocation4], 0
    %10 = vsyncpa [#allocation7], 0
    // Predicated region
    $region2: #{tpu_custom_call.1} parent=1 // pred_check
      _
    $region3: #{tpu_custom_call.1} parent=1 // pred_check_branch
      %12 = sbr.rel (0) target = $region5
    $region4: #{tpu_custom_call.1} parent=1 // pred_region
      %s13 = sadd.s32 0, 0
      %s14 = smul.u32 2, %s13
      %16 = vsyncadd [#allocation3], 0
      %s17 = smul.addr %s14, 8
      %s18 = scalar_lea.hbm %s0, %s17
      %s19 = sshll.u32 %s18, 4
      %s20 = int_to_ptr.hbm [resolvable:$true] %s19
      %s21 = sshll.u32 [#allocation2], 4
      %s22 = int_to_ptr.vmem [resolvable:$true] %s21
      %27 = dma.hbm_to_vmem [thread:$0]  %s20, 256, %s22, [#allocation3], 128, 128, 8
    $region5: #{tpu_custom_call.1} parent=1 // pred_fallthru
      _
    // Predicated region
    $region6: #{tpu_custom_call.1} parent=1 // pred_check
      _
    $region7: #{tpu_custom_call.1} parent=1 // pred_check_branch
      %29 = sbr.rel (0) target = $region9
    $region8: #{tpu_custom_call.1} parent=1 // pred_region
      %31 = dma.done [#allocation3], 256
    $region9: #{tpu_custom_call.1} parent=1 // pred_fallthru
      _
    %s32 = sadd.s32 0, 0
    %s33 = smul.u32 2, %s32
    %p34 = scmp.eq.s32.totalorder 0, 0
    // Predicated region
    $region10: #{tpu_custom_call.1} parent=1 // pred_check
      %p35 = pneg %p34
    $region11: #{tpu_custom_call.1} parent=1 // pred_check_branch
      %37 = sbr.rel (%p35) target = $region13
    $region12: #{tpu_custom_call.1} parent=1 // pred_region
      %38 = vst [vmem:[#allocation5] sm:$0xff] 0.0
      %39 = vst [vmem:[#allocation6] sm:$0xff] 0.0
    $region13: #{tpu_custom_call.1} parent=1 // pred_fallthru
      _
    %v40 = vld [vmem:[#allocation2] sm:$0xff]
    %v41 = vld [vmem:[#allocation2 + $0x8] sm:$0xff]
    %v42 = vld [vmem:[#allocation5] sm:$0xff]
    %v43 = vadd.f32 %v40, %v41
    %v44 = vadd.f32 %v42, %v43
    %45 = vst [vmem:[#allocation5] sm:$0xff] %v44
    %v46 = vld [vmem:[#allocation6] sm:$0xff]
    %v47 = vmul.f32 %v40, %v40
    %v48 = vmul.f32 %v41, %v41
    %v49 = vadd.f32 %v47, %v48
    %v50 = vadd.f32 %v46, %v49
    %51 = vst [vmem:[#allocation6] sm:$0xff] %v50
    // Predicated region
    $region14: #{tpu_custom_call.1} parent=1 // pred_check
      _
    $region15: #{tpu_custom_call.1} parent=1 // pred_check_branch
      %53 = sbr.rel (0) target = $region17
    $region16: #{tpu_custom_call.1} parent=1 // pred_region
      %55 = vsyncadd [#allocation4], 0
      %s57 = sshll.u32 [#allocation5], 4
      %s58 = int_to_ptr.vmem [resolvable:$true] %s57
      %s59 = sshll.u32 %s1, 4
      %s60 = int_to_ptr.hbm [resolvable:$true] %s59
      %62 = dma.vmem_to_hbm [thread:$0]  %s58, 128, %s60, [#allocation4]
    $region17: #{tpu_custom_call.1} parent=1 // pred_fallthru
      _
    // Predicated region
    $region18: #{tpu_custom_call.1} parent=1 // pred_check
      _
    $region19: #{tpu_custom_call.1} parent=1 // pred_check_branch
      %64 = sbr.rel (0) target = $region21
    $region20: #{tpu_custom_call.1} parent=1 // pred_region
      %66 = vsyncadd [#allocation7], 0
      %s68 = sshll.u32 [#allocation6], 4
      %s69 = int_to_ptr.vmem [resolvable:$true] %s68
      %s70 = sshll.u32 %s2, 4
      %s71 = int_to_ptr.hbm [resolvable:$true] %s70
      %73 = dma.vmem_to_hbm [thread:$0]  %s69, 128, %s71, [#allocation7]
    $region21: #{tpu_custom_call.1} parent=1 // pred_fallthru
      _
    // Predicated region
    $region22: #{tpu_custom_call.1} parent=1 // pred_check
      _
    $region23: #{tpu_custom_call.1} parent=1 // pred_check_branch
      %75 = sbr.rel (0) target = $region25
    $region24: #{tpu_custom_call.1} parent=1 // pred_region
      %77 = dma.done [#allocation4], 128
    $region25: #{tpu_custom_call.1} parent=1 // pred_fallthru
      _
    // Predicated region
    $region26: #{tpu_custom_call.1} parent=1 // pred_check
      _
    $region27: #{tpu_custom_call.1} parent=1 // pred_check_branch
      %79 = sbr.rel (0) target = $region29
    $region28: #{tpu_custom_call.1} parent=1 // pred_region
      %81 = dma.done [#allocation7], 128
    $region29: #{tpu_custom_call.1} parent=1 // pred_fallthru
      _
    %82 = vsyncpa [#allocation3], 1
    %83 = vsyncpa [#allocation4], 1
    %84 = vsyncpa [#allocation7], 1

</llo_original>
